<compile_context>
chip_gen: v6e
topology: v6e:2x2x1
jax: 0.10.0
libtpu: 0.0.40
codegen_flags: <defaults>
</compile_context>

<pallas_src>
import functools

import jax
import jax.numpy as jnp
from jax.experimental import pallas as pl
from jax.experimental.pallas import tpu as pltpu

ALPHA = 0.25              # FocalLoss alpha
GAMMA = 2.0               # FocalLoss gamma (== 2 -> explicit square in kernel)
SMOOTH = 1e-6             # DiceLoss smooth
EPS = 1e-6                # FocalLoss log epsilon
LANES = 128
MAX_BLOCK_BYTES = 2 * 1024 * 1024   # ~2 MiB per input per grid step


def _round_up(x, m):
    return ((x + m - 1) // m) * m


def _dicefocal_partial_kernel(rows, block_rows, num_blocks, apply_mask,
                              out_ref, tgt_ref, part_ref):
    """One grid step: per-lane partial sums over one (block_rows, 128) slab.

    part_ref rows (each a (128,) per-lane partial):
      0: sum(output * target)        (dice intersection)
      1: sum(output + target)        (dice denominator)
      2: sum(focal_loss elementwise) (mean taken in wrapper)
    """
    p = out_ref[...].astype(jnp.float32)
    t = tgt_ref[...].astype(jnp.float32)

    def store_sums(p, t):
        pt = p * t                       # intersection
        s = p + t                        # dice denominator term
        d = s - 2.0 * pt                 # = 1 - p_t
        p_t = 1.0 - d
        alpha_neg = 0.5 * t - 0.75       # = -(t*ALPHA + (1-t)*(1-ALPHA))
        fl = (alpha_neg * (d * d)) * jnp.log(p_t + EPS)   # square, not pow
        part_ref[0, 0, :] = jnp.sum(pt, axis=0)
        part_ref[0, 1, :] = jnp.sum(s, axis=0)
        part_ref[0, 2, :] = jnp.sum(fl, axis=0)

    if apply_mask:
        # Only the LAST block reads past `rows` (block padding is unspecified).
        # Gate the mask to that step only; the mask itself is a static
        # row-iota compare (whole out-of-range rows zeroed; zeros are inert:
        # p_t = 1 -> focal term 0, dice sums 0).
        last = num_blocks - 1
        valid_rows = rows - last * block_rows    # static Python int

        @pl.when(pl.program_id(0) != last)
        def _():
            store_sums(p, t)

        @pl.when(pl.program_id(0) == last)
        def _():
            row = jax.lax.broadcasted_iota(jnp.int32, (block_rows, LANES), 0)
            m = row < valid_rows
            store_sums(jnp.where(m, p, 0.0), jnp.where(m, t, 0.0))
    else:
        store_sums(p, t)


def _elem_sums(p, t):
    """Plain-JAX partial sums for the <=127-element unaligned tail."""
    p = p.astype(jnp.float32)
    t = t.astype(jnp.float32)
    pt = p * t
    s = p + t
    d = s - 2.0 * pt
    fl = (0.5 * t - 0.75) * (d * d) * jnp.log((1.0 - d) + EPS)
    return jnp.sum(pt), jnp.sum(s), jnp.sum(fl)


def dicefocal_loss(output, target):
    """DiceFocal_Loss.forward(output, target) -> scalar float32."""
    assert output.shape == target.shape
    n_elem = int(output.size)

    flat_o = output.reshape(-1)
    flat_t = target.reshape(-1)

    # Lane-aligned prefix goes to the kernel; tiny tail handled in plain JAX
    # (avoids full-array jnp.pad copies, which would double HBM traffic).
    rows = n_elem // LANES
    n_main = rows * LANES
    tail = n_elem - n_main

    inter = jnp.float32(0.0)
    s_sum = jnp.float32(0.0)
    fl_sum = jnp.float32(0.0)

    if rows > 0:
        itemsize = int(jnp.dtype(output.dtype).itemsize)
        sublane = max(8, 32 // max(itemsize, 1))          # 8 f32 / 16 bf16 / 32 i8
        max_block_rows = max(sublane, MAX_BLOCK_BYTES // (LANES * itemsize))
        block_rows = min(max_block_rows, _round_up(rows, sublane))
        num_blocks = pl.cdiv(rows, block_rows)
        apply_mask = (rows % block_rows) != 0

        kernel = functools.partial(
            _dicefocal_partial_kernel, rows, block_rows, num_blocks, apply_mask)

        partials = pl.pallas_call(
            kernel,
            out_shape=jax.ShapeDtypeStruct((num_blocks, 3, LANES), jnp.float32),
            grid_spec=pltpu.PrefetchScalarGridSpec(
                num_scalar_prefetch=0,
                grid=(num_blocks,),
                in_specs=[
                    pl.BlockSpec((block_rows, LANES), lambda i: (i, 0)),
                    pl.BlockSpec((block_rows, LANES), lambda i: (i, 0)),
                ],
                out_specs=pl.BlockSpec((1, 3, LANES), lambda i: (i, 0, 0)),
            ),
            compiler_params=pltpu.CompilerParams(
                dimension_semantics=("parallel",),     # independent blocks; 2-TC split on v7x
                vmem_limit_bytes=48 * 1024 * 1024,     # 2 in x 2 buf x 2 MiB + temps, <64 MiB
            ),
        )(flat_o[:n_main].reshape(rows, LANES),
          flat_t[:n_main].reshape(rows, LANES))

        sums = jnp.sum(partials, axis=(0, 2))          # tiny (num_blocks,3,128) reduce
        inter = inter + sums[0]
        s_sum = s_sum + sums[1]
        fl_sum = fl_sum + sums[2]

    if tail:
        t_pt, t_s, t_fl = _elem_sums(flat_o[n_main:], flat_t[n_main:])
        inter = inter + t_pt
        s_sum = s_sum + t_s
        fl_sum = fl_sum + t_fl

    dice = (2.0 * inter + SMOOTH) / (s_sum + SMOOTH)
    dice_loss = 1.0 - dice
    focal_loss = fl_sum / n_elem                       # reduction='mean'
    return dice_loss + focal_loss


def _reference(output, target):
    """Pure-JAX reference mirroring the PyTorch module."""
    p = output.astype(jnp.float32)
    t = target.astype(jnp.float32)
    inter = jnp.sum(p * t)
    dice = (2.0 * inter + SMOOTH) / (jnp.sum(p) + jnp.sum(t) + SMOOTH)
    dice_loss = 1.0 - dice
    p_t = t * p + (1.0 - t) * (1.0 - p)
    alpha = t * ALPHA + (1.0 - t) * (1.0 - ALPHA)
    fl = -alpha * (1.0 - p_t) ** GAMMA * jnp.log(p_t + EPS)
    return dice_loss + jnp.mean(fl)


if __name__ == "__main__":
    key = jax.random.PRNGKey(0)
    k1, k2 = jax.random.split(key)

    # Small segmentation-style shapes: (N, C, H, W) = (2, 4, 16, 16)
    shape = (2, 4, 16, 16)
    output = jax.nn.sigmoid(jax.random.normal(k1, shape, dtype=jnp.float32))
    target = (jax.random.uniform(k2, shape) > 0.5).astype(jnp.float32)

    loss = jax.block_until_ready(jax.jit(dicefocal_loss)(output, target))
    ref = jax.block_until_ready(_reference(output, target))

    assert jnp.allclose(loss, ref, rtol=1e-5, atol=1e-5), (loss, ref)
    print("KERNEL_OK")
</pallas_src>

<mosaic_0001>
module attributes {stable_mosaic.version = 11 : i64} {
  func.func @_dicefocal_partial_kernel(%arg0: i32, %arg1: memref<16x128xf32, #tpu.memory_space<vmem>>, %arg2: memref<16x128xf32, #tpu.memory_space<vmem>>, %arg3: memref<1x3x128xf32, #tpu.memory_space<vmem>>) attributes {dimension_semantics = [#tpu.dimension_semantics<parallel>], iteration_bounds = array<i64: 1>, scalar_prefetch = 0 : i64, scratch_operands = 0 : i64, tpu.core_type = #tpu.core_type<tc>, window_params = [{transform_indices = @transform_0, window_bounds = array<i64: 16, 128>}, {transform_indices = @transform_1, window_bounds = array<i64: 16, 128>}, {transform_indices = @transform_2, window_bounds = array<i64: 1, 3, 128>}]} {
    %c0 = arith.constant 0 : index
    %c0_0 = arith.constant 0 : index
    %0 = vector.load %arg1[%c0, %c0_0] : memref<16x128xf32, #tpu.memory_space<vmem>>, vector<16x128xf32>
    %c0_1 = arith.constant 0 : index
    %c0_2 = arith.constant 0 : index
    %1 = vector.load %arg2[%c0_1, %c0_2] : memref<16x128xf32, #tpu.memory_space<vmem>>, vector<16x128xf32>
    %2 = arith.mulf %0, %1 : vector<16x128xf32>
    %3 = arith.addf %0, %1 : vector<16x128xf32>
    %cst = arith.constant 2.000000e+00 : f32
    %4 = vector.broadcast %cst : f32 to vector<16x128xf32>
    %5 = arith.mulf %4, %2 : vector<16x128xf32>
    %6 = arith.subf %3, %5 : vector<16x128xf32>
    %cst_3 = arith.constant 1.000000e+00 : f32
    %7 = vector.broadcast %cst_3 : f32 to vector<16x128xf32>
    %8 = arith.subf %7, %6 : vector<16x128xf32>
    %cst_4 = arith.constant 5.000000e-01 : f32
    %9 = vector.broadcast %cst_4 : f32 to vector<16x128xf32>
    %10 = arith.mulf %9, %1 : vector<16x128xf32>
    %cst_5 = arith.constant 7.500000e-01 : f32
    %11 = vector.broadcast %cst_5 : f32 to vector<16x128xf32>
    %12 = arith.subf %10, %11 : vector<16x128xf32>
    %13 = arith.mulf %6, %6 : vector<16x128xf32>
    %14 = arith.mulf %12, %13 : vector<16x128xf32>
    %cst_6 = arith.constant 9.99999997E-7 : f32
    %15 = vector.broadcast %cst_6 : f32 to vector<16x128xf32>
    %16 = arith.addf %8, %15 : vector<16x128xf32>
    %17 = math.log %16 : vector<16x128xf32>
    %18 = arith.mulf %14, %17 : vector<16x128xf32>
    %cst_7 = arith.constant dense<0.000000e+00> : vector<128xf32>
    %19 = vector.multi_reduction <add>, %2, %cst_7 [0] : vector<16x128xf32> to vector<128xf32>
    %c0_8 = arith.constant 0 : index
    %c0_9 = arith.constant 0 : index
    %c0_10 = arith.constant 0 : index
    %20 = vector.load %arg3[%c0_8, %c0_9, %c0_10] : memref<1x3x128xf32, #tpu.memory_space<vmem>>, vector<1x1x128xf32>
    %21 = vector.shape_cast %20 : vector<1x1x128xf32> to vector<128xf32>
    %22 = vector.shape_cast %19 : vector<128xf32> to vector<1x1x128xf32>
    tpu.vector_store %arg3[%c0_8, %c0_9, %c0_10], %22 {strides = array<i32>} : memref<1x3x128xf32, #tpu.memory_space<vmem>>, vector<1x1x128xf32>,
    %cst_11 = arith.constant dense<0.000000e+00> : vector<128xf32>
    %23 = vector.multi_reduction <add>, %3, %cst_11 [0] : vector<16x128xf32> to vector<128xf32>
    %c0_12 = arith.constant 0 : index
    %c1 = arith.constant 1 : index
    %c0_13 = arith.constant 0 : index
    %24 = vector.load %arg3[%c0_12, %c1, %c0_13] : memref<1x3x128xf32, #tpu.memory_space<vmem>>, vector<1x1x128xf32>
    %25 = vector.shape_cast %24 : vector<1x1x128xf32> to vector<128xf32>
    %26 = vector.shape_cast %23 : vector<128xf32> to vector<1x1x128xf32>
    tpu.vector_store %arg3[%c0_12, %c1, %c0_13], %26 {strides = array<i32>} : memref<1x3x128xf32, #tpu.memory_space<vmem>>, vector<1x1x128xf32>,
    %cst_14 = arith.constant dense<0.000000e+00> : vector<128xf32>
    %27 = vector.multi_reduction <add>, %18, %cst_14 [0] : vector<16x128xf32> to vector<128xf32>
    %c0_15 = arith.constant 0 : index
    %c2 = arith.constant 2 : index
    %c0_16 = arith.constant 0 : index
    %28 = vector.load %arg3[%c0_15, %c2, %c0_16] : memref<1x3x128xf32, #tpu.memory_space<vmem>>, vector<1x1x128xf32>
    %29 = vector.shape_cast %28 : vector<1x1x128xf32> to vector<128xf32>
    %30 = vector.shape_cast %27 : vector<128xf32> to vector<1x1x128xf32>
    tpu.vector_store %arg3[%c0_15, %c2, %c0_16], %30 {strides = array<i32>} : memref<1x3x128xf32, #tpu.memory_space<vmem>>, vector<1x1x128xf32>,
    return
  }
  func.func @transform_0(%arg0: i32) -> (i32, i32) {
    %c0_i32 = arith.constant 0 : i32
    %c0_i32_0 = arith.constant 0 : i32
    return %arg0, %c0_i32 : i32, i32
  }
  func.func @transform_1(%arg0: i32) -> (i32, i32) {
    %c0_i32 = arith.constant 0 : i32
    %c0_i32_0 = arith.constant 0 : i32
    return %arg0, %c0_i32 : i32, i32
  }
  func.func @transform_2(%arg0: i32) -> (i32, i32, i32) {
    %c0_i32 = arith.constant 0 : i32
    %c0_i32_0 = arith.constant 0 : i32
    %c0_i32_1 = arith.constant 0 : i32
    return %arg0, %c0_i32, %c0_i32_0 : i32, i32, i32
  }
}

</mosaic_0001>

<llo_original>
// kernel: dicefocal_loss.1
$region0: #{dicefocal_loss.1}
  #allocation0 [shape = 'u32[]', space=smem, size = 0x4, offset = 0x4, fixed_abs, tag = 'smem constant byte address 0x4 - core index']
  #allocation1 [shape = 'u32[144,128]{1,0:T(1,128)}', space=vmem, size = 0x12000, scoped, tag = 'internal scratch']
  %s0 = inlined_call_operand.vmem [shape: f32[16,128], index: 0, kind: input, shape index: {}]
  %s1 = inlined_call_operand.vmem [shape: f32[16,128], index: 1, kind: input, shape index: {}]
  %s2 = inlined_call_operand.vmem [shape: f32[1,3,128], index: 2, kind: output, shape index: {}]
  %s3 = sld [smem:[#allocation0]]
  $region18: #{dicefocal_loss.1} parent=0
    _
  %s5 = ssub.s32 1, %s3
  %s6 = scalar_select 0, %s5, %s3
  // Predicated region
  $region2: #{dicefocal_loss.1} parent=0 // pred_check
    _
  $region3: #{dicefocal_loss.1} parent=0 // pred_check_branch
    %8 = sbr.rel (0) target = $region5
  $region4: #{dicefocal_loss.1} parent=0 // pred_region
    _
  $region5: #{dicefocal_loss.1} parent=0 // pred_fallthru
    _
  // Predicated region
  $region6: #{dicefocal_loss.1} parent=0 // pred_check
    _
  $region7: #{dicefocal_loss.1} parent=0 // pred_check_branch
    %10 = sbr.rel (0) target = $region9
  $region8: #{dicefocal_loss.1} parent=0 // pred_region
    _
  $region9: #{dicefocal_loss.1} parent=0 // pred_fallthru
    _
  %v11 = vld [vmem:[%s0] sm:$0xff]
  %v12 = vld [vmem:[%s0 + $0x8] sm:$0xff]
  %v13 = vld [vmem:[%s1] sm:$0xff]
  %v14 = vld [vmem:[%s1 + $0x8] sm:$0xff]
  %v15 = vmul.f32 %v11, %v13
  %v16 = vmul.f32 %v12, %v14
  %v17 = vadd.f32 %v11, %v13
  %v18 = vadd.f32 %v12, %v14
  %v19 = vmul.f32 %v15, 2.0
  %v20 = vmul.f32 %v16, 2.0
  %v21 = vsub.f32 %v17, %v19
  %v22 = vsub.f32 %v18, %v20
  %v23 = vsub.f32 1.0, %v21
  %v24 = vsub.f32 1.0, %v22
  %v25 = vmul.f32 %v13, 0.5
  %v26 = vmul.f32 %v14, 0.5
  %v27 = vsub.f32 %v25, 0.75
  %v28 = vsub.f32 %v26, 0.75
  %v29 = vmul.f32 %v21, %v21
  %v30 = vmul.f32 %v22, %v22
  %v31 = vmul.f32 %v27, %v29
  %v32 = vmul.f32 %v28, %v30
  %v33 = vadd.f32 %v23, 1e-06
  %v34 = vadd.f32 %v24, 1e-06
  %v35 = vlog2.pop %v33
  %v36 = vmul.f32 %v35, 0.6931472
  %v37 = vlog2.pop %v34
  %v38 = vmul.f32 %v37, 0.6931472
  %v39 = vmul.f32 %v31, %v36
  %v40 = vmul.f32 %v32, %v38
  %v41 = vadd.f32 %v15, %v16
  %v42 = vrot.slane %v41, 4
  %v43 = vadd.f32 %v41, %v42
  %v44 = vrot.slane %v43, 2
  %v45 = vadd.f32 %v43, %v44
  %v46 = vrot.slane %v45, 1
  %v47 = vadd.f32 %v45, %v46
  %48 = vst [vmem:[%s2] sm:$0x1] %v47
  %v49 = vadd.f32 %v17, %v18
  %v50 = vrot.slane %v49, 4
  %v51 = vadd.f32 %v49, %v50
  %v52 = vrot.slane %v51, 2
  %v53 = vadd.f32 %v51, %v52
  %v54 = vrot.slane %v53, 1
  %v55 = vadd.f32 %v53, %v54
  %56 = vst [vmem:[%s2 + $0x1] sm:$0x1] %v55
  %v57 = vadd.f32 %v39, %v40
  %v58 = vrot.slane %v57, 4
  %v59 = vadd.f32 %v57, %v58
  %v60 = vrot.slane %v59, 2
  %v61 = vadd.f32 %v59, %v60
  %v62 = vrot.slane %v61, 1
  %v63 = vadd.f32 %v61, %v62
  %64 = vst [vmem:[%s2 + $0x2] sm:$0x1] %v63
  // Predicated region
  $region10: #{dicefocal_loss.1} parent=0 // pred_check
    _
  $region11: #{dicefocal_loss.1} parent=0 // pred_check_branch
    %66 = sbr.rel (0) target = $region13
  $region12: #{dicefocal_loss.1} parent=0 // pred_region
    _
  $region13: #{dicefocal_loss.1} parent=0 // pred_fallthru
    _
  // Predicated region
  $region14: #{dicefocal_loss.1} parent=0 // pred_check
    _
  $region15: #{dicefocal_loss.1} parent=0 // pred_check_branch
    %68 = sbr.rel (0) target = $region17
  $region16: #{dicefocal_loss.1} parent=0 // pred_region
    _
  $region17: #{dicefocal_loss.1} parent=0 // pred_fallthru
    _

</llo_original>
